<compile_context>
chip_gen: v5e
topology: v5e:2x2
jax: 0.10.0
libtpu: 0.0.40
codegen_flags: <defaults>
</compile_context>

<pallas_src>
import jax
import jax.numpy as jnp
from jax.experimental import pallas as pl
from jax.experimental.pallas import tpu as pltpu


# ----------------------------------------------------------------------------- kernel
def _make_fused_kernel(n, compute_dtype):
    """out = sum_i x_i @ W'_i + b'   (n dots, f32 accumulation)."""
    def kernel(*refs):
        x_refs = refs[:n]
        w_refs = refs[n:2 * n]
        b_ref = refs[2 * n]
        out_ref = refs[2 * n + 1]
        # In-kernel cast to the MXU compute dtype (one VPU pass, avoids a separate
        # XLA cast pass over the activations in HBM).
        acc = jnp.dot(x_refs[0][...].astype(compute_dtype), w_refs[0][...],
                      preferred_element_type=jnp.float32)
        for i in range(1, n):
            acc = acc + jnp.dot(x_refs[i][...].astype(compute_dtype), w_refs[i][...],
                                preferred_element_type=jnp.float32)
        out_ref[...] = (acc + b_ref[...]).astype(out_ref.dtype)
    return kernel


# --------------------------------------------------------------------- load-time prep
def prepare_fused_params(proj_ws, proj_bs, fusion_w, fusion_b,
                         compute_dtype=jnp.bfloat16):
    """One-time (load-time) algebraic fusion of the two Linear stages.

    Returns per-modality fused weights W'_i = W_i @ Wf_i  (D_i, F) in compute_dtype
    and the fused bias b' = sum_i b_i @ Wf_i + bf  shaped (1, F) in f32.
    """
    n = len(proj_ws)
    F = fusion_w.shape[1]
    hi = jax.lax.Precision.HIGHEST   # amortized cost; avoid default bf16-pass f32 dot
    wf_slices = [fusion_w[i * F:(i + 1) * F, :] for i in range(n)]          # (F, F)
    w_fused = [jnp.dot(proj_ws[i], wf_slices[i], precision=hi).astype(compute_dtype)
               for i in range(n)]                                           # (D_i, F)
    b_fused = fusion_b + sum(jnp.dot(proj_bs[i], wf_slices[i], precision=hi)
                             for i in range(n))                             # (F,)
    return w_fused, b_fused.reshape(1, F).astype(jnp.float32)


# ------------------------------------------------------------------------ tile picker
def _pick_batch_tile(B, cap=256):
    """Bounded batch tile: multiple of 8, divides B, <= cap, prefers >= 2 programs
    (keeps double-buffering legal in VMEM and lets v7x's 2 TensorCores split work)."""
    if B % 8 != 0:
        return B                       # small / odd batch: keep fully resident
    target = min(cap, max(8, B // 2))
    target -= target % 8
    for cand in range(target, 7, -8):
        if B % cand == 0:
            return cand
    return B


# ---------------------------------------------------------------------- per-call path
def multimodal_fusion_fused(modalities, w_fused, b_fused, *,
                            batch_tile=None, f_tile=None):
    """Forward pass using the pre-fused parameters from prepare_fused_params."""
    n = len(modalities)
    assert len(w_fused) == n
    B = modalities[0].shape[0]
    dims = [m.shape[1] for m in modalities]
    F = w_fused[0].shape[1]
    compute_dtype = w_fused[0].dtype

    # ---- tile selection -------------------------------------------------------
    tb = _pick_batch_tile(B) if batch_tile is None else batch_tile
    assert B % tb == 0 and (tb == B or tb % 8 == 0), "bad batch tile"

    if f_tile is not None:
        tf = f_tile
    elif F % 256 == 0 and F > 512:
        tf = 256          # 256-wide tiles keep the full v6e/v7x MXU width fed
    else:
        tf = F            # full extent: legal even when F < 128, no pad / no slice
    assert F % tf == 0 and (tf == F or tf % 128 == 0), "bad F tile"
    # TODO(synk): for very large per-modality dims (K >~ 4K) add an innermost
    # "arbitrary" K grid axis with a VMEM f32 accumulator to bound per-step VMEM.

    # Batch innermost so the weight block (index depends only on j) stays resident
    # across consecutive steps -> the dominant operand is streamed from HBM once.
    grid = (F // tf, B // tb)

    in_specs = (
        [pl.BlockSpec((tb, d), lambda j, i: (i, 0)) for d in dims] +   # activations
        [pl.BlockSpec((d, tf), lambda j, i: (0, j)) for d in dims] +   # fused weights
        [pl.BlockSpec((1, tf), lambda j, i: (0, j))]                   # fused bias
    )
    out_spec = pl.BlockSpec((tb, tf), lambda j, i: (i, j))

    # ---- VMEM budget / cost hint ----------------------------------------------
    cbytes = jnp.finfo(compute_dtype).bits // 8
    block_bytes = (sum(tb * d * modalities[k].dtype.itemsize for k, d in enumerate(dims))
                   + sum(d * tf * cbytes for d in dims)
                   + tf * 4                       # bias block
                   + tb * tf * 4)                 # output block
    # 2-deep pipelining + headroom; cap at 48 MiB so it is legal on v7x (64 MiB phys).
    vmem_limit = int(min(max(2 * block_bytes + (4 << 20), 16 << 20), 48 << 20))

    K = sum(dims)
    cost = pl.CostEstimate(
        flops=2 * B * K * F,
        transcendentals=0,
        bytes_accessed=B * K * modalities[0].dtype.itemsize
                       + K * F * cbytes + F * 4 + B * F * 4,
    )

    fn = pl.pallas_call(
        _make_fused_kernel(n, compute_dtype),
        out_shape=jax.ShapeDtypeStruct((B, F), jnp.float32),
        grid_spec=pltpu.PrefetchScalarGridSpec(
            num_scalar_prefetch=0,
            grid=grid,
            in_specs=in_specs,
            out_specs=out_spec,
        ),
        compiler_params=pltpu.CompilerParams(
            dimension_semantics=("parallel", "parallel"),
            vmem_limit_bytes=vmem_limit,
        ),
        cost_estimate=cost,
    )
    return fn(*modalities, *w_fused, b_fused)


# ------------------------------------------------------------------------------- demo
def _init_linear(key, in_dim, out_dim):
    """Deterministic init mimicking torch.nn.Linear defaults (uniform +-1/sqrt(in))."""
    kw, kb = jax.random.split(key)
    bound = 1.0 / jnp.sqrt(jnp.float32(in_dim))
    w = jax.random.uniform(kw, (in_dim, out_dim), jnp.float32, -bound, bound)
    b = jax.random.uniform(kb, (out_dim,), jnp.float32, -bound, bound)
    return w, b


if __name__ == "__main__":
    key = jax.random.PRNGKey(0)

    modality_dims = (8, 16, 32)
    fusion_dim = 32
    batch = 16
    n = len(modality_dims)

    keys = jax.random.split(key, 2 * n + 2)

    modalities = [
        jax.random.normal(keys[i], (batch, d), jnp.float32)
        for i, d in enumerate(modality_dims)
    ]

    proj_ws, proj_bs = [], []
    for i, d in enumerate(modality_dims):
        w, b = _init_linear(keys[n + i], d, fusion_dim)
        proj_ws.append(w)
        proj_bs.append(b)

    fusion_w, fusion_b = _init_linear(keys[2 * n], fusion_dim * n, fusion_dim)

    # One-time load-time weight fusion (hoisted out of the per-call hot path).
    w_fused, b_fused = prepare_fused_params(proj_ws, proj_bs, fusion_w, fusion_b)
    w_fused = [jax.block_until_ready(w) for w in w_fused]
    b_fused = jax.block_until_ready(b_fused)

    out = multimodal_fusion_fused(modalities, w_fused, b_fused)
    out = jax.block_until_ready(out)

    # Pure-JAX reference (mirrors the PyTorch forward exactly, all f32, two stages).
    projected = [x @ w + b for x, w, b in zip(modalities, proj_ws, proj_bs)]
    concatenated = jnp.concatenate(projected, axis=1)
    ref = concatenated @ fusion_w + fusion_b

    assert out.shape == (batch, fusion_dim)
    # bf16 MXU operands with f32 accumulation + algebraic re-association.
    assert jnp.allclose(out, ref, atol=5e-2, rtol=5e-2), (
        float(jnp.max(jnp.abs(out - ref))))

    print("KERNEL_OK")
</pallas_src>

<mosaic_0001>
module attributes {stable_mosaic.version = 11 : i64} {
  func.func @kernel(%arg0: i32, %arg1: i32, %arg2: memref<8x8xf32, #tpu.memory_space<vmem>>, %arg3: memref<8x16xf32, #tpu.memory_space<vmem>>, %arg4: memref<8x32xf32, #tpu.memory_space<vmem>>, %arg5: memref<8x32xbf16, #tpu.memory_space<vmem>>, %arg6: memref<16x32xbf16, #tpu.memory_space<vmem>>, %arg7: memref<32x32xbf16, #tpu.memory_space<vmem>>, %arg8: memref<1x32xf32, #tpu.memory_space<vmem>>, %arg9: memref<8x32xf32, #tpu.memory_space<vmem>>) attributes {dimension_semantics = [#tpu.dimension_semantics<parallel>, #tpu.dimension_semantics<parallel>], iteration_bounds = array<i64: 1, 2>, scalar_prefetch = 0 : i64, scratch_operands = 0 : i64, tpu.core_type = #tpu.core_type<tc>, window_params = [{transform_indices = @transform_0, window_bounds = array<i64: 8, 8>}, {transform_indices = @transform_1, window_bounds = array<i64: 8, 16>}, {transform_indices = @transform_2, window_bounds = array<i64: 8, 32>}, {transform_indices = @transform_3, window_bounds = array<i64: 8, 32>}, {transform_indices = @transform_4, window_bounds = array<i64: 16, 32>}, {transform_indices = @transform_5, window_bounds = array<i64: 32, 32>}, {transform_indices = @transform_6, window_bounds = array<i64: 1, 32>}, {transform_indices = @transform_7, window_bounds = array<i64: 8, 32>}]} {
    %c0 = arith.constant 0 : index
    %c0_0 = arith.constant 0 : index
    %0 = vector.load %arg2[%c0, %c0_0] : memref<8x8xf32, #tpu.memory_space<vmem>>, vector<8x8xf32>
    %1 = arith.truncf %0 : vector<8x8xf32> to vector<8x8xbf16>
    %c0_1 = arith.constant 0 : index
    %c0_2 = arith.constant 0 : index
    %2 = vector.load %arg5[%c0_1, %c0_2] : memref<8x32xbf16, #tpu.memory_space<vmem>>, vector<8x32xbf16>
    %cst = arith.constant dense<0.000000e+00> : vector<8x32xf32>
    %3 = tpu.matmul %1, %2, %cst {dimension_numbers = #tpu.dot_dimension_numbers<[1], [0], [0], [1], [0, 0, 1, 1], [], []>} : vector<8x8xbf16>, vector<8x32xbf16>, vector<8x32xf32> -> vector<8x32xf32>
    %c0_3 = arith.constant 0 : index
    %c0_4 = arith.constant 0 : index
    %4 = vector.load %arg3[%c0_3, %c0_4] : memref<8x16xf32, #tpu.memory_space<vmem>>, vector<8x16xf32>
    %5 = arith.truncf %4 : vector<8x16xf32> to vector<8x16xbf16>
    %c0_5 = arith.constant 0 : index
    %c0_6 = arith.constant 0 : index
    %6 = vector.load %arg6[%c0_5, %c0_6] : memref<16x32xbf16, #tpu.memory_space<vmem>>, vector<16x32xbf16>
    %cst_7 = arith.constant dense<0.000000e+00> : vector<8x32xf32>
    %7 = tpu.matmul %5, %6, %cst_7 {dimension_numbers = #tpu.dot_dimension_numbers<[1], [0], [0], [1], [0, 0, 1, 1], [], []>} : vector<8x16xbf16>, vector<16x32xbf16>, vector<8x32xf32> -> vector<8x32xf32>
    %8 = arith.addf %3, %7 : vector<8x32xf32>
    %c0_8 = arith.constant 0 : index
    %c0_9 = arith.constant 0 : index
    %9 = vector.load %arg4[%c0_8, %c0_9] : memref<8x32xf32, #tpu.memory_space<vmem>>, vector<8x32xf32>
    %10 = arith.truncf %9 : vector<8x32xf32> to vector<8x32xbf16>
    %c0_10 = arith.constant 0 : index
    %c0_11 = arith.constant 0 : index
    %11 = vector.load %arg7[%c0_10, %c0_11] : memref<32x32xbf16, #tpu.memory_space<vmem>>, vector<32x32xbf16>
    %cst_12 = arith.constant dense<0.000000e+00> : vector<8x32xf32>
    %12 = tpu.matmul %10, %11, %cst_12 {dimension_numbers = #tpu.dot_dimension_numbers<[1], [0], [0], [1], [0, 0, 1, 1], [], []>} : vector<8x32xbf16>, vector<32x32xbf16>, vector<8x32xf32> -> vector<8x32xf32>
    %13 = arith.addf %8, %12 : vector<8x32xf32>
    %c0_13 = arith.constant 0 : index
    %c0_14 = arith.constant 0 : index
    %14 = vector.load %arg8[%c0_13, %c0_14] : memref<1x32xf32, #tpu.memory_space<vmem>>, vector<1x32xf32>
    %15 = vector.broadcast %14 : vector<1x32xf32> to vector<8x32xf32>
    %16 = arith.addf %13, %15 : vector<8x32xf32>
    %c0_15 = arith.constant 0 : index
    %c0_16 = arith.constant 0 : index
    %17 = vector.load %arg9[%c0_15, %c0_16] : memref<8x32xf32, #tpu.memory_space<vmem>>, vector<8x32xf32>
    tpu.vector_store %arg9[%c0_15, %c0_16], %16 {strides = array<i32>} : memref<8x32xf32, #tpu.memory_space<vmem>>, vector<8x32xf32>,
    return
  }
  func.func @transform_0(%arg0: i32, %arg1: i32) -> (i32, i32) {
    %c0_i32 = arith.constant 0 : i32
    %c0_i32_0 = arith.constant 0 : i32
    return %arg1, %c0_i32 : i32, i32
  }
  func.func @transform_1(%arg0: i32, %arg1: i32) -> (i32, i32) {
    %c0_i32 = arith.constant 0 : i32
    %c0_i32_0 = arith.constant 0 : i32
    return %arg1, %c0_i32 : i32, i32
  }
  func.func @transform_2(%arg0: i32, %arg1: i32) -> (i32, i32) {
    %c0_i32 = arith.constant 0 : i32
    %c0_i32_0 = arith.constant 0 : i32
    return %arg1, %c0_i32 : i32, i32
  }
  func.func @transform_3(%arg0: i32, %arg1: i32) -> (i32, i32) {
    %c0_i32 = arith.constant 0 : i32
    %c0_i32_0 = arith.constant 0 : i32
    return %c0_i32, %arg0 : i32, i32
  }
  func.func @transform_4(%arg0: i32, %arg1: i32) -> (i32, i32) {
    %c0_i32 = arith.constant 0 : i32
    %c0_i32_0 = arith.constant 0 : i32
    return %c0_i32, %arg0 : i32, i32
  }
  func.func @transform_5(%arg0: i32, %arg1: i32) -> (i32, i32) {
    %c0_i32 = arith.constant 0 : i32
    %c0_i32_0 = arith.constant 0 : i32
    return %c0_i32, %arg0 : i32, i32
  }
  func.func @transform_6(%arg0: i32, %arg1: i32) -> (i32, i32) {
    %c0_i32 = arith.constant 0 : i32
    %c0_i32_0 = arith.constant 0 : i32
    return %c0_i32, %arg0 : i32, i32
  }
  func.func @transform_7(%arg0: i32, %arg1: i32) -> (i32, i32) {
    %c0_i32 = arith.constant 0 : i32
    return %arg1, %arg0 : i32, i32
  }
}

</mosaic_0001>

<llo_original>
// kernel: tpu_custom_call.1
$region0: #{tpu_custom_call.1}
  #allocation0 [shape = 'u32[]', space=smem, size = 0x4, offset = 0x4, fixed_abs, tag = 'smem constant byte address 0x4 - core index']
  #allocation1 [shape = 'u32[72,128]{1,0:T(1,128)}', space=vmem, size = 0x9000, scoped, tag = 'internal scratch']
  %s0 = inlined_call_operand.vmem [shape: f32[16,8], index: 0, kind: input, shape index: {}]
  %s1 = inlined_call_operand.vmem [shape: f32[16,16], index: 1, kind: input, shape index: {}]
  %s2 = inlined_call_operand.hbm [shape: f32[16,32], index: 2, kind: input, shape index: {}]
  %s3 = inlined_call_operand.hbm [shape: bf16[8,32], index: 3, kind: input, shape index: {}]
  %s4 = inlined_call_operand.vmem [shape: bf16[16,32], index: 4, kind: input, shape index: {}]
  %s5 = inlined_call_operand.hbm [shape: bf16[32,32], index: 5, kind: input, shape index: {}]
  %s6 = inlined_call_operand.vmem [shape: f32[1,32], index: 6, kind: input, shape index: {}]
  %s7 = inlined_call_operand.hbm [shape: f32[16,32], index: 7, kind: output, shape index: {}]
  %s8 = sld [smem:[#allocation0]]
  $region73: #{tpu_custom_call.1} parent=0
    _
  %s10 = ssub.s32 1, %s8
  %s11 = scalar_select 0, %s10, %s8
  $region1: #{tpu_custom_call.1} parent=0
    #allocation2 [shape = 'u8[8192]{0}', space=vmem, size = 0x2000, scoped, tag = 'input window, operand 2']
    #allocation3 [shape = 's32[2]{0}', space=sflag, size = 0x8, scoped, tag = 'scoped memory for tpu_custom_call.1']
    #allocation4 [shape = 's32[2]{0}', space=sflag, size = 0x8, scoped, tag = 'scoped memory for tpu_custom_call.1']
    #allocation5 [shape = 'u8[2048]{0}', space=vmem, size = 0x800, scoped, tag = 'input window, operand 3, single buffered']
    #allocation6 [shape = 's32[1]{0}', space=sflag, size = 0x4, scoped, tag = 'scoped memory for tpu_custom_call.1']
    #allocation7 [shape = 'u8[8192]{0}', space=vmem, size = 0x2000, scoped, tag = 'input window, operand 5, single buffered']
    #allocation8 [shape = 'u8[8192]{0}', space=vmem, size = 0x2000, scoped, tag = 'output window, operand 0']
    %12 = vsyncpa [#allocation3], 0
    %s13 = scalar_lea.sflag [#allocation3], 1
    %14 = vsyncpa %s13, 0
    %15 = vsyncpa [#allocation6], 0
    %16 = vsyncpa [#allocation4], 0
    %s17 = scalar_lea.sflag [#allocation4], 1
    %18 = vsyncpa %s17, 0
    loop: start=0, step=1, limit=4
    $region2: #{tpu_custom_call.1} parent=1 // loop_pre_header
      _
    $region3: #{tpu_custom_call.1} parent=1 // loop_header
      %s20 = sphi 0, %s24
      %p21 = scmp.ge.s32.totalorder %s20, 4
      %s27 = sphi 0, %s39
      %s28 = sphi 0, %s35
      %s29 = sphi 0, %s27
      %s30 = sphi 0, %s28
      %s31 = sphi 0, %s29
      %s32 = sphi 0, %s30
      %s42 = sphi 0, %s44
      %s45 = sphi 0, %s42
      %s46 = sphi 0, %s45
      %s62 = sphi 0, %s46
      %s68 = sphi 0, %s70
      %s71 = sphi 0, %s68
      %s72 = sphi 0, %s71
      %s88 = sphi 0, %s72
      %s94 = sphi 0, %s96
      %s97 = sphi 0, %s94
      %s98 = sphi 0, %s97
      %s114 = sphi 0, %s98
      %s120 = sphi 0, %s122
      %s123 = sphi 0, %s120
      %s124 = sphi 0, %s123
      %s140 = sphi 0, %s124
      %s146 = sphi 0, %s148
      %s149 = sphi 0, %s146
      %s150 = sphi 0, %s149
      %s166 = sphi 0, %s150
      %s172 = sphi 0, %s174
      %s175 = sphi 0, %s172
      %s176 = sphi 0, %s175
      %s192 = sphi 0, %s176
      %s198 = sphi 0, %s200
      %s201 = sphi 0, %s198
      %s202 = sphi 0, %s201
      %s218 = sphi 0, %s202
      %s226 = sphi 0, %s228
      %s229 = sphi 0, %s226
      %s230 = sphi 0, %s229
      %s246 = sphi 0, %s230
    $region4: #{tpu_custom_call.1} parent=1 // loop_header_branch
      %23 = sbr.rel (%p21) target = $region8
    $region5: #{tpu_custom_call.1} parent=1 // loop_body
      %s25 = ssub.s32 %s20, 1
      %s26 = ssub.s32 %s20, 2
      %s33 = sadd.s32 1, %s28
      %p34 = scmp.ge.s32.totalorder %s33, 2
      %s35 = scalar_select %p34, 0, %s33
      %s36 = sadd.s32 1, %s27
      %s37 = scalar_select %p34, %s36, %s27
      %p38 = scmp.ge.s32.totalorder %s37, 1
      %s39 = scalar_select %p38, 0, %s37
      %s40 = ssub.s32 %s28, %s35
      %p41 = scmp.eq.s32.totalorder %s40, 0
      %s43 = sadd.s32 %s42, 1
      %s44 = scalar_select %p41, %s42, %s43
      %p47 = pneg %p41
      %p48 = scmp.eq.s32.totalorder %s20, 1
      %p49 = por %p47, %p48
      %p50 = scmp.ne.s32.totalorder %s42, %s45
      %p51 = scmp.eq.s32.totalorder %s20, 0
      %p52 = por %p50, %p51
      %p53 = scmp.ne.s32.totalorder %s42, %s45
      %p54 = scmp.eq.s32.totalorder %s25, 1
      %p55 = por %p53, %p54
      %p56 = scmp.ne.s32.totalorder %s45, %s46
      %p57 = scmp.eq.s32.totalorder %s25, 0
      %p58 = por %p56, %p57
      %p59 = scmp.ne.s32.totalorder %s45, %s46
      %p60 = scmp.eq.s32.totalorder %s26, 1
      %p61 = por %p59, %p60
      %p63 = scmp.ne.s32.totalorder %s46, %s62
      %p64 = scmp.eq.s32.totalorder %s26, 0
      %p65 = por %p63, %p64
      %s66 = ssub.s32 %s28, %s35
      %p67 = scmp.eq.s32.totalorder %s66, 0
      %s69 = sadd.s32 %s68, 1
      %s70 = scalar_select %p67, %s68, %s69
      %p73 = pneg %p67
      %p74 = scmp.eq.s32.totalorder %s20, 1
      %p75 = por %p73, %p74
      %p76 = scmp.ne.s32.totalorder %s68, %s71
      %p77 = scmp.eq.s32.totalorder %s20, 0
      %p78 = por %p76, %p77
      %p79 = scmp.ne.s32.totalorder %s68, %s71
      %p80 = scmp.eq.s32.totalorder %s25, 1
      %p81 = por %p79, %p80
      %p82 = scmp.ne.s32.totalorder %s71, %s72
      %p83 = scmp.eq.s32.totalorder %s25, 0
      %p84 = por %p82, %p83
      %p85 = scmp.ne.s32.totalorder %s71, %s72
      %p86 = scmp.eq.s32.totalorder %s26, 1
      %p87 = por %p85, %p86
      %p89 = scmp.ne.s32.totalorder %s72, %s88
      %p90 = scmp.eq.s32.totalorder %s26, 0
      %p91 = por %p89, %p90
      %s92 = ssub.s32 %s28, %s35
      %p93 = scmp.eq.s32.totalorder %s92, 0
      %s95 = sadd.s32 %s94, 1
      %s96 = scalar_select %p93, %s94, %s95
      %p99 = pneg %p93
      %p100 = scmp.eq.s32.totalorder %s20, 1
      %p101 = por %p99, %p100
      %p102 = scmp.ne.s32.totalorder %s94, %s97
      %p103 = scmp.eq.s32.totalorder %s20, 0
      %p104 = por %p102, %p103
      %p105 = scmp.ne.s32.totalorder %s94, %s97
      %p106 = scmp.eq.s32.totalorder %s25, 1
      %p107 = por %p105, %p106
      %p108 = scmp.ne.s32.totalorder %s97, %s98
      %p109 = scmp.eq.s32.totalorder %s25, 0
      %p110 = por %p108, %p109
      %p111 = scmp.ne.s32.totalorder %s97, %s98
      %p112 = scmp.eq.s32.totalorder %s26, 1
      %p113 = por %p111, %p112
      %p115 = scmp.ne.s32.totalorder %s98, %s114
      %p116 = scmp.eq.s32.totalorder %s26, 0
      %p117 = por %p115, %p116
      %s118 = ssub.s32 %s27, %s39
      %p119 = scmp.eq.s32.totalorder %s118, 0
      %s121 = sadd.s32 %s120, 1
      %s122 = scalar_select %p119, %s120, %s121
      %p125 = pneg %p119
      %p126 = scmp.eq.s32.totalorder %s20, 1
      %p127 = por %p125, %p126
      %p128 = scmp.ne.s32.totalorder %s120, %s123
      %p129 = scmp.eq.s32.totalorder %s20, 0
      %p130 = por %p128, %p129
      %p131 = scmp.ne.s32.totalorder %s120, %s123
      %p132 = scmp.eq.s32.totalorder %s25, 1
      %p133 = por %p131, %p132
      %p134 = scmp.ne.s32.totalorder %s123, %s124
      %p135 = scmp.eq.s32.totalorder %s25, 0
      %p136 = por %p134, %p135
      %p137 = scmp.ne.s32.totalorder %s123, %s124
      %p138 = scmp.eq.s32.totalorder %s26, 1
      %p139 = por %p137, %p138
      %p141 = scmp.ne.s32.totalorder %s124, %s140
      %p142 = scmp.eq.s32.totalorder %s26, 0
      %p143 = por %p141, %p142
      %s144 = ssub.s32 %s27, %s39
      %p145 = scmp.eq.s32.totalorder %s144, 0
      %s147 = sadd.s32 %s146, 1
      %s148 = scalar_select %p145, %s146, %s147
      %p151 = pneg %p145
      %p152 = scmp.eq.s32.totalorder %s20, 1
      %p153 = por %p151, %p152
      %p154 = scmp.ne.s32.totalorder %s146, %s149
      %p155 = scmp.eq.s32.totalorder %s20, 0
      %p156 = por %p154, %p155
      %p157 = scmp.ne.s32.totalorder %s146, %s149
      %p158 = scmp.eq.s32.totalorder %s25, 1
      %p159 = por %p157, %p158
      %p160 = scmp.ne.s32.totalorder %s149, %s150
      %p161 = scmp.eq.s32.totalorder %s25, 0
      %p162 = por %p160, %p161
      %p163 = scmp.ne.s32.totalorder %s149, %s150
      %p164 = scmp.eq.s32.totalorder %s26, 1
      %p165 = por %p163, %p164
      %p167 = scmp.ne.s32.totalorder %s150, %s166
      %p168 = scmp.eq.s32.totalorder %s26, 0
      %p169 = por %p167, %p168
      %s170 = ssub.s32 %s27, %s39
      %p171 = scmp.eq.s32.totalorder %s170, 0
      %s173 = sadd.s32 %s172, 1
      %s174 = scalar_select %p171, %s172, %s173
      %p177 = pneg %p171
      %p178 = scmp.eq.s32.totalorder %s20, 1
      %p179 = por %p177, %p178
      %p180 = scmp.ne.s32.totalorder %s172, %s175
      %p181 = scmp.eq.s32.totalorder %s20, 0
      %p182 = por %p180, %p181
      %p183 = scmp.ne.s32.totalorder %s172, %s175
      %p184 = scmp.eq.s32.totalorder %s25, 1
      %p185 = por %p183, %p184
      %p186 = scmp.ne.s32.totalorder %s175, %s176
      %p187 = scmp.eq.s32.totalorder %s25, 0
      %p188 = por %p186, %p187
      %p189 = scmp.ne.s32.totalorder %s175, %s176
      %p190 = scmp.eq.s32.totalorder %s26, 1
      %p191 = por %p189, %p190
      %p193 = scmp.ne.s32.totalorder %s176, %s192
      %p194 = scmp.eq.s32.totalorder %s26, 0
      %p195 = por %p193, %p194
      %s196 = ssub.s32 %s27, %s39
      %p197 = scmp.eq.s32.totalorder %s196, 0
      %s199 = sadd.s32 %s198, 1
      %s200 = scalar_select %p197, %s198, %s199
      %p203 = pneg %p197
      %p204 = scmp.eq.s32.totalorder %s20, 1
      %p205 = por %p203, %p204
      %p206 = scmp.ne.s32.totalorder %s198, %s201
      %p207 = scmp.eq.s32.totalorder %s20, 0
      %p208 = por %p206, %p207
      %p209 = scmp.ne.s32.totalorder %s198, %s201
      %p210 = scmp.eq.s32.totalorder %s25, 1
      %p211 = por %p209, %p210
      %p212 = scmp.ne.s32.totalorder %s201, %s202
      %p213 = scmp.eq.s32.totalorder %s25, 0
      %p214 = por %p212, %p213
      %p215 = scmp.ne.s32.totalorder %s201, %s202
      %p216 = scmp.eq.s32.totalorder %s26, 1
      %p217 = por %p215, %p216
      %p219 = scmp.ne.s32.totalorder %s202, %s218
      %p220 = scmp.eq.s32.totalorder %s26, 0
      %p221 = por %p219, %p220
      %s222 = ssub.s32 %s28, %s35
      %s223 = ssub.s32 %s27, %s39
      %s224 = sor.u32 %s222, %s223
      %p225 = scmp.eq.s32.totalorder %s224, 0
      %s227 = sadd.s32 %s226, 1
      %s228 = scalar_select %p225, %s226, %s227
      %p231 = pneg %p225
      %p232 = scmp.eq.s32.totalorder %s20, 1
      %p233 = por %p231, %p232
      %p234 = scmp.ne.s32.totalorder %s226, %s229
      %p235 = scmp.eq.s32.totalorder %s20, 0
      %p236 = por %p234, %p235
      %p237 = scmp.ne.s32.totalorder %s226, %s229
      %p238 = scmp.eq.s32.totalorder %s25, 1
      %p239 = por %p237, %p238
      %p240 = scmp.ne.s32.totalorder %s229, %s230
      %p241 = scmp.eq.s32.totalorder %s25, 0
      %p242 = por %p240, %p241
      %p243 = scmp.ne.s32.totalorder %s229, %s230
      %p244 = scmp.eq.s32.totalorder %s26, 1
      %p245 = por %p243, %p244
      %p247 = scmp.ne.s32.totalorder %s230, %s246
      %p248 = scmp.eq.s32.totalorder %s26, 0
      %p249 = por %p247, %p248
      %p250 = scmp.le.s32.totalorder 1, %s20
      %p251 = scmp.lt.s32.totalorder %s20, 3
      %p252 = pnand %p250, %p251
      %p253 = pneg %p252
      // Predicated region
      $region9: #{tpu_custom_call.1} parent=5 // pred_check
        _
      $region10: #{tpu_custom_call.1} parent=5 // pred_check_branch
        %255 = sbr.rel (%p252) target = $region12
      $region11: #{tpu_custom_call.1} parent=5 // pred_region
        %s256 = ssub.s32 %s20, 1
        // Predicated region
        $region13: #{tpu_custom_call.1} parent=11 // pred_check
          %p257 = pneg %p136
        $region14: #{tpu_custom_call.1} parent=11 // pred_check_branch
          %259 = sbr.rel (%p257) target = $region16
        $region15: #{tpu_custom_call.1} parent=11 // pred_region
          %261 = vsyncadd [#allocation6], 0
          %s262 = smul.addr %s29, 4
          %s263 = scalar_lea.hbm %s3, %s262
          %s265 = sshll.u32 %s263, 4
          %s266 = int_to_ptr.hbm [resolvable:$true] %s265
          %s267 = sshll.u32 [#allocation5], 4
          %s268 = int_to_ptr.vmem [resolvable:$true] %s267
          %270 = dma.hbm_to_vmem [thread:$0]  %s266, 64, %s268, [#allocation6]
        $region16: #{tpu_custom_call.1} parent=11 // pred_fallthru
          _
        // Predicated region
        $region17: #{tpu_custom_call.1} parent=11 // pred_check
          %p271 = pneg %p162
        $region18: #{tpu_custom_call.1} parent=11 // pred_check_branch
          %273 = sbr.rel (%p271) target = $region20
        $region19: #{tpu_custom_call.1} parent=11 // pred_region
          %p274 = scmp.lt.s32.totalorder %s29, 0
          %s275 = scalar_select %p274, %s29, 0
          %s276 = smul.addr %s275, 4
          %s277 = scalar_lea.vmem %s4, %s276
        $region20: #{tpu_custom_call.1} parent=11 // pred_fallthru
          _
        // Predicated region
        $region21: #{tpu_custom_call.1} parent=11 // pred_check
          %p278 = pneg %p188
        $region22: #{tpu_custom_call.1} parent=11 // pred_check_branch
          %280 = sbr.rel (%p278) target = $region24
        $region23: #{tpu_custom_call.1} parent=11 // pred_region
          %282 = vsyncadd [#allocation6], 0
          %s283 = smul.addr %s29, 4
          %s284 = scalar_lea.hbm %s5, %s283
          %s285 = sshll.u32 %s284, 4
          %s286 = int_to_ptr.hbm [resolvable:$true] %s285
          %s287 = sshll.u32 [#allocation7], 4
          %s288 = int_to_ptr.vmem [resolvable:$true] %s287
          %293 = dma.hbm_to_vmem [thread:$0]  %s286, 256, %s288, [#allocation6], 64, 64, 4
        $region24: #{tpu_custom_call.1} parent=11 // pred_fallthru
          _
        // Predicated region
        $region25: #{tpu_custom_call.1} parent=11 // pred_check
          %p294 = pneg %p214
        $region26: #{tpu_custom_call.1} parent=11 // pred_check_branch
          %296 = sbr.rel (%p294) target = $region28
        $region27: #{tpu_custom_call.1} parent=11 // pred_region
          %p297 = scmp.lt.s32.totalorder %s29, 0
          %s298 = scalar_select %p297, %s29, 0
          %s299 = scalar_lea.vmem %s6, %s298
        $region28: #{tpu_custom_call.1} parent=11 // pred_fallthru
          _
      $region12: #{tpu_custom_call.1} parent=5 // pred_fallthru
        _
      %p300 = scmp.lt.s32.totalorder %s20, 2
      // Predicated region
      $region29: #{tpu_custom_call.1} parent=5 // pred_check
        %p301 = pneg %p300
      $region30: #{tpu_custom_call.1} parent=5 // pred_check_branch
        %303 = sbr.rel (%p301) target = $region32
      $region31: #{tpu_custom_call.1} parent=5 // pred_region
        // Predicated region
        $region33: #{tpu_custom_call.1} parent=31 // pred_check
          %p304 = pneg %p52
        $region34: #{tpu_custom_call.1} parent=31 // pred_check_branch
          %306 = sbr.rel (%p304) target = $region36
        $region35: #{tpu_custom_call.1} parent=31 // pred_region
          %p307 = scmp.lt.s32.totalorder %s28, 1
          %s308 = scalar_select %p307, %s28, 1
          %s309 = smul.addr %s308, 8
          %s310 = scalar_lea.vmem %s0, %s309
        $region36: #{tpu_custom_call.1} parent=31 // pred_fallthru
          _
        // Predicated region
        $region37: #{tpu_custom_call.1} parent=31 // pred_check
          %p311 = pneg %p78
        $region38: #{tpu_custom_call.1} parent=31 // pred_check_branch
          %313 = sbr.rel (%p311) target = $region40
        $region39: #{tpu_custom_call.1} parent=31 // pred_region
          %p314 = scmp.lt.s32.totalorder %s28, 1
          %s315 = scalar_select %p314, %s28, 1
          %s316 = smul.addr %s315, 8
          %s317 = scalar_lea.vmem %s1, %s316
        $region40: #{tpu_custom_call.1} parent=31 // pred_fallthru
          _
        // Predicated region
        $region41: #{tpu_custom_call.1} parent=31 // pred_check
          %p318 = pneg %p104
        $region42: #{tpu_custom_call.1} parent=31 // pred_check_branch
          %320 = sbr.rel (%p318) target = $region44
        $region43: #{tpu_custom_call.1} parent=31 // pred_region
          %s321 = sand.u32 %s94, 1
          %s322 = scalar_lea.sflag [#allocation3], %s321
          %s323 = sand.u32 %s94, 1
          %s324 = smul.addr %s323, 8
          %s325 = scalar_lea.vmem [#allocation2], %s324
          %327 = vsyncadd %s322, 0
          %s328 = smul.addr %s28, 8
          %s329 = scalar_lea.hbm %s2, %s328
          %s331 = sshll.u32 %s329, 4
          %s332 = int_to_ptr.hbm [resolvable:$true] %s331
          %s333 = sshll.u32 %s325, 4
          %s334 = int_to_ptr.vmem [resolvable:$true] %s333
          %336 = dma.hbm_to_vmem [thread:$0]  %s332, 128, %s334, %s322
        $region44: #{tpu_custom_call.1} parent=31 // pred_fallthru
          _
      $region32: #{tpu_custom_call.1} parent=5 // pred_fallthru
        _
      %p337 = scmp.le.s32.totalorder 1, %s20
      %p338 = scmp.lt.s32.totalorder %s20, 3
      %p339 = pnand %p337, %p338
      %p340 = pneg %p339
      // Predicated region
      $region45: #{tpu_custom_call.1} parent=5 // pred_check
        _
      $region46: #{tpu_custom_call.1} parent=5 // pred_check_branch
        %342 = sbr.rel (%p339) target = $region48
      $region47: #{tpu_custom_call.1} parent=5 // pred_region
        %s343 = ssub.s32 %s20, 1
        %s344 = sand.u32 %s97, 1
        %s345 = scalar_lea.sflag [#allocation3], %s344
        %s346 = sand.u32 %s97, 1
        %s347 = smul.addr %s346, 8
        %s348 = scalar_lea.vmem [#allocation2], %s347
        // Predicated region
        $region49: #{tpu_custom_call.1} parent=47 // pred_check
          %p349 = pneg %p110
        $region50: #{tpu_custom_call.1} parent=47 // pred_check_branch
          %351 = sbr.rel (%p349) target = $region52
        $region51: #{tpu_custom_call.1} parent=47 // pred_region
          %353 = dma.done %s345, 128
        $region52: #{tpu_custom_call.1} parent=47 // pred_fallthru
          _
        // Predicated region
        $region53: #{tpu_custom_call.1} parent=47 // pred_check
          %p354 = pneg %p136
        $region54: #{tpu_custom_call.1} parent=47 // pred_check_branch
          %356 = sbr.rel (%p354) target = $region56
        $region55: #{tpu_custom_call.1} parent=47 // pred_region
          %358 = dma.done [#allocation6], 64
        $region56: #{tpu_custom_call.1} parent=47 // pred_fallthru
          _
        // Predicated region
        $region57: #{tpu_custom_call.1} parent=47 // pred_check
          %p359 = pneg %p188
        $region58: #{tpu_custom_call.1} parent=47 // pred_check_branch
          %361 = sbr.rel (%p359) target = $region60
        $region59: #{tpu_custom_call.1} parent=47 // pred_region
          %363 = dma.done [#allocation6], 256
        $region60: #{tpu_custom_call.1} parent=47 // pred_fallthru
          _
        %p364 = scmp.lt.s32.totalorder %s30, 1
        %s365 = scalar_select %p364, %s30, 1
        %s366 = smul.addr %s365, 8
        %s367 = scalar_lea.vmem %s0, %s366
        %p368 = pneg %p58
        %p369 = pneg %p55
        %p370 = scmp.lt.s32.totalorder %s30, 1
        %s371 = scalar_select %p370, %s30, 1
        %s372 = smul.addr %s371, 8
        %s373 = scalar_lea.vmem %s1, %s372
        %p374 = pneg %p84
        %p375 = pneg %p81
        %s376 = sand.u32 %s97, 1
        %s377 = scalar_lea.sflag [#allocation3], %s376
        %s378 = sand.u32 %s97, 1
        %s379 = smul.addr %s378, 8
        %s380 = scalar_lea.vmem [#allocation2], %s379
        %p381 = pneg %p110
        %p382 = pneg %p107
        %p383 = pneg %p136
        %p384 = pneg %p133
        %p385 = scmp.lt.s32.totalorder %s29, 0
        %s386 = scalar_select %p385, %s29, 0
        %s387 = smul.addr %s386, 4
        %s388 = scalar_lea.vmem %s4, %s387
        %p389 = pneg %p162
        %p390 = pneg %p159
        %p391 = pneg %p188
        %p392 = pneg %p185
        %p393 = scmp.lt.s32.totalorder %s29, 0
        %s394 = scalar_select %p393, %s29, 0
        %s395 = scalar_lea.vmem %s6, %s394
        %p396 = pneg %p214
        %p397 = pneg %p211
        %p398 = pneg %p242
        %p399 = pneg %p239
        %s400 = sand.u32 %s229, 1
        %s401 = scalar_lea.sflag [#allocation4], %s400
        %s402 = sand.u32 %s229, 1
        %s403 = smul.addr %s402, 8
        %s404 = scalar_lea.vmem [#allocation8], %s403
        %p405 = scmp.lt.s32.totalorder %s30, 1
        %s406 = scalar_select %p405, %s30, 1
        %s407 = smul.addr %s406, 8
        %s408 = scalar_lea.vmem %s0, %s407
        %p409 = scmp.lt.s32.totalorder %s30, 1
        %s410 = scalar_select %p409, %s30, 1
        %s411 = smul.addr %s410, 8
        %s412 = scalar_lea.vmem %s1, %s411
        %p413 = scmp.lt.s32.totalorder %s29, 0
        %s414 = scalar_select %p413, %s29, 0
        %s415 = smul.addr %s414, 4
        %s416 = scalar_lea.vmem %s4, %s415
        %p417 = scmp.lt.s32.totalorder %s29, 0
        %s418 = scalar_select %p417, %s29, 0
        %s419 = scalar_lea.vmem %s6, %s418
        %v421 = vld [vmem:[%s408] sm:$0xff]
        %v422 = vpack.c.bf16 %v421, %v421
        %v423 = vld [vmem:[#allocation5] sm:$0xf]
        %v424 = vld [vmem:[%s412] sm:$0xff]
        %v425 = vpack.c.bf16 %v424, %v424
        %v426 = vld [vmem:[%s416] sm:$0xf]
        %v427 = vld [vmem:[%s416 + $0x4] sm:$0xf]
        %v430 = vunpack.c.l.b16 %v426
        %v431 = vunpack.c.l.b16 %v427
        %v432 = vpack.c.b16 %v431, %v430
        %vm434 = vcmask 130048
        %v436 = vsel %vm434, %v425, 0
        %438 = vmatpush.bf16.msra.mxu0 0
        %439 = vmatpush.bf16.msra.mxu0 0
        %440 = vmatpush.bf16.msra.mxu0 0
        %441 = vmatpush.bf16.msra.mxu0 0
        %442 = vmatpush.bf16.msra.mxu0 0
        %443 = vmatpush.bf16.msra.mxu0 0
        %444 = vmatpush.bf16.msra.mxu0 0
        %445 = vmatpush.bf16.msra.mxu0 %v432
        %446 = vmatmul.bf16.gmra.mxu0 %v436
        %v447 = vpop.f32.mrf.mxu0
        %v448 = vadd.f32 0.0, %v447
        %v449 = vpop.f32.mrf.mxu0
        %450 = vdwg.mxu0
        %vm451 = vcmask 64512
        %v453 = vsel %vm451, %v422, 0
        %vm455 = vcmask 1043456
        %v457 = vsel %vm455, %v423, 0
        %459 = vmatpush.bf16.msra.mxu0 0
        %460 = vmatpush.bf16.msra.mxu0 0
        %461 = vmatpush.bf16.msra.mxu0 0
        %462 = vmatpush.bf16.msra.mxu0 0
        %463 = vmatpush.bf16.msra.mxu0 0
        %464 = vmatpush.bf16.msra.mxu0 0
        %465 = vmatpush.bf16.msra.mxu0 0
        %466 = vmatpush.bf16.msra.mxu0 %v457
        %467 = vmatmul.bf16.gmra.mxu0 %v453
        %v468 = vpop.f32.mrf.mxu0
        %v469 = vadd.f32 %v448, %v468
        %v470 = vpop.f32.mrf.mxu0
        %471 = vdwg.mxu0
        %v472 = vld [vmem:[%s348] sm:$0xff]
        %v473 = vpack.c.bf16 %v472, %v472
        %v474 = vld [vmem:[#allocation7] sm:$0xf]
        %v475 = vld [vmem:[#allocation7 + $0x4] sm:$0xf]
        %v476 = vld [vmem:[#allocation7 + $0x8] sm:$0xf]
        %v477 = vld [vmem:[#allocation7 + $0xc] sm:$0xf]
        %v482 = vunpack.c.l.b16 %v474
        %v483 = vunpack.c.l.b16 %v475
        %v484 = vunpack.c.l.b16 %v476
        %v485 = vunpack.c.l.b16 %v477
        %v486 = vpack.c.b16 %v483, %v482
        %v487 = vpack.c.b16 %v485, %v484
        %vm490 = vcmask 261120
        %v492 = vsel %vm490, %v473, 0
        %494 = vmatpush.bf16.msra.mxu0 0
        %495 = vmatpush.bf16.msra.mxu0 0
        %496 = vmatpush.bf16.msra.mxu0 0
        %497 = vmatpush.bf16.msra.mxu0 0
        %498 = vmatpush.bf16.msra.mxu0 0
        %499 = vmatpush.bf16.msra.mxu0 0
        %500 = vmatpush.bf16.msra.mxu0 %v487
        %501 = vmatpush.bf16.msra.mxu0 %v486
        %502 = vmatmul.bf16.gmra.mxu0 %v492
        %v503 = vpop.f32.mrf.mxu0
        %v504 = vadd.f32 0.0, %v503
        %v505 = vpop.f32.mrf.mxu0
        %506 = vdwg.mxu0
        %v507 = vadd.f32 %v469, %v504
        %v508 = vld [vmem:[%s419] sm:$0x1]
        %v510 = vperm.slane %v508, 0
        %v512 = vadd.f32 %v507, %v510
        %513 = vst.msk [vmem:[%s404] sm:$0xff] %vm490, %v512
        %s514 = sand.u32 %s229, 1
        %s515 = scalar_lea.sflag [#allocation4], %s514
        %s516 = sand.u32 %s229, 1
        %s517 = smul.addr %s516, 8
        %s518 = scalar_lea.vmem [#allocation8], %s517
        // Predicated region
        $region61: #{tpu_custom_call.1} parent=47 // pred_check
          %p519 = pneg %p239
        $region62: #{tpu_custom_call.1} parent=47 // pred_check_branch
          %521 = sbr.rel (%p519) target = $region64
        $region63: #{tpu_custom_call.1} parent=47 // pred_region
          %523 = vsyncadd %s515, 0
          %s524 = sadd.s32 %s29, %s30
          %s525 = smul.addr %s524, 8
          %s526 = scalar_lea.hbm %s7, %s525
          %s528 = sshll.u32 %s518, 4
          %s529 = int_to_ptr.vmem [resolvable:$true] %s528
          %s530 = sshll.u32 %s526, 4
          %s531 = int_to_ptr.hbm [resolvable:$true] %s530
          %533 = dma.vmem_to_hbm [thread:$0]  %s529, 128, %s531, %s515
        $region64: #{tpu_custom_call.1} parent=47 // pred_fallthru
          _
      $region48: #{tpu_custom_call.1} parent=5 // pred_fallthru
        _
      %p534 = scmp.le.s32.totalorder 2, %s20
      // Predicated region
      $region65: #{tpu_custom_call.1} parent=5 // pred_check
        %p535 = pneg %p534
      $region66: #{tpu_custom_call.1} parent=5 // pred_check_branch
        %537 = sbr.rel (%p535) target = $region68
      $region67: #{tpu_custom_call.1} parent=5 // pred_region
        %s538 = ssub.s32 %s20, 2
        // Predicated region
        $region69: #{tpu_custom_call.1} parent=67 // pred_check
          %p539 = pneg %p245
        $region70: #{tpu_custom_call.1} parent=67 // pred_check_branch
          %541 = sbr.rel (%p539) target = $region72
        $region71: #{tpu_custom_call.1} parent=67 // pred_region
          %s542 = sand.u32 %s230, 1
          %s543 = scalar_lea.sflag [#allocation4], %s542
          %s544 = sand.u32 %s230, 1
          %s545 = smul.addr %s544, 8
          %s546 = scalar_lea.vmem [#allocation8], %s545
          %548 = dma.done %s543, 128
        $region72: #{tpu_custom_call.1} parent=67 // pred_fallthru
          _
      $region68: #{tpu_custom_call.1} parent=5 // pred_fallthru
        _
    $region6: #{tpu_custom_call.1} parent=1 // loop_footer
      %s24 = sadd.s32 1, %s20
    $region7: #{tpu_custom_call.1} parent=1 // loop_footer_branch
      %19 = sbr.rel target = $region3
    $region8: #{tpu_custom_call.1} parent=1 // loop_exit
      _
    %549 = vsyncpa [#allocation3], 1
    %s550 = scalar_lea.sflag [#allocation3], 1
    %551 = vsyncpa %s550, 1
    %552 = vsyncpa [#allocation6], 1
    %553 = vsyncpa [#allocation4], 1
    %s554 = scalar_lea.sflag [#allocation4], 1
    %555 = vsyncpa %s554, 1

</llo_original>
